<compile_context>
chip_gen: v7x
topology: tpu7x:2x2x1
jax: 0.10.0
libtpu: 0.0.40
codegen_flags: <defaults>
</compile_context>

<pallas_src>
import functools

import jax
import jax.numpy as jnp
from jax.experimental import pallas as pl
from jax.experimental.pallas import tpu as pltpu


_D_CHUNK = 1024  # lanes per in-kernel reduction chunk (bounds f32 temporaries)


def _row_sums(p_ref, z_ref, tile_b: int, feat: int):
    """Per-row (dot, ||p||^2, ||z||^2), each (tile_b, 1) f32, VMEM-bounded."""
    if feat <= _D_CHUNK or feat % _D_CHUNK != 0:
        p = p_ref[...].astype(jnp.float32)
        z = z_ref[...].astype(jnp.float32)
        return (jnp.sum(p * z, axis=-1, keepdims=True),
                jnp.sum(p * p, axis=-1, keepdims=True),
                jnp.sum(z * z, axis=-1, keepdims=True))

    zeros = jnp.zeros((tile_b, 1), jnp.float32)

    def body(c, carry):
        dot, pn2, zn2 = carry
        start = pl.multiple_of(c * _D_CHUNK, _D_CHUNK)
        p = p_ref[:, pl.ds(start, _D_CHUNK)].astype(jnp.float32)
        z = z_ref[:, pl.ds(start, _D_CHUNK)].astype(jnp.float32)
        return (dot + jnp.sum(p * z, axis=-1, keepdims=True),
                pn2 + jnp.sum(p * p, axis=-1, keepdims=True),
                zn2 + jnp.sum(z * z, axis=-1, keepdims=True))

    return jax.lax.fori_loop(0, feat // _D_CHUNK, body, (zeros, zeros, zeros))


def _neg_cos_partial_kernel(p1_ref, z2_ref, p2_ref, z1_ref, out_ref, *,
                            mode: str, batch: int, tile_b: int, feat: int):
    """One (tile_b, feat) batch tile of all four inputs -> -0.5 * sum(cos)."""
    i = pl.program_id(0)

    needs_mask = (batch % tile_b) != 0
    if needs_mask:
        row_ids = i * tile_b + jax.lax.broadcasted_iota(
            jnp.int32, (tile_b, 1), 0)
        row_valid = row_ids < batch                       # (tile_b, 1) bool

    def pair_cos_sum(p_ref, z_ref):
        dot, pn2, zn2 = _row_sums(p_ref, z_ref, tile_b, feat)
        if mode == "simplified":
            # F.cosine_similarity: denom = max(sqrt(||p||^2 * ||z||^2), 1e-8).
            eps = jnp.float32(1e-8)
            inv = jax.lax.rsqrt(jnp.maximum(pn2 * zn2, eps * eps))
        else:
            # F.normalize: each norm clamped independently at 1e-12.
            eps = jnp.float32(1e-12)
            inv = (jax.lax.rsqrt(jnp.maximum(pn2, eps * eps)) *
                   jax.lax.rsqrt(jnp.maximum(zn2, eps * eps)))
        cos = dot * inv
        if needs_mask:
            cos = jnp.where(row_valid, cos, jnp.float32(0.0))
        return jnp.sum(cos)

    partial = jnp.float32(-0.5) * (pair_cos_sum(p1_ref, z2_ref) +
                                   pair_cos_sum(p2_ref, z1_ref))
    # Lane-dense (8, 128) output block per grid step; wrapper reads [:, 0, 0].
    out_ref[...] = jnp.full(out_ref.shape, partial, dtype=jnp.float32)


def _vmem_budget_bytes() -> int:
    """Generation-aware VMEM budget: 75% of per-core capacity (>= 16 MiB)."""
    cap = 64 * 1024 * 1024  # conservative default = v7x per-TensorCore VMEM
    try:
        cap = int(getattr(pltpu.get_tpu_info(), "vmem_capacity_bytes", cap))
    except Exception:
        pass
    return max(16 * 1024 * 1024, (cap * 3) // 4)


def _choose_tile_b(batch: int, feat: int, itemsize: int, pack: int,
                   vmem_budget: int, buffer_count: int) -> int:
    """Pick the batch-tile size from D, dtype and the VMEM budget."""
    # VMEM bytes per batch row: 4 inputs x pipeline buffers in native dtype,
    # plus ~6 f32 temporaries over one reduction chunk (upcasts + products).
    chunk = min(feat, _D_CHUNK)
    per_row = 4 * buffer_count * feat * itemsize + 6 * chunk * 4
    max_rows = max(pack, vmem_budget // per_row)

    # Target ~8 MiB of fresh input bytes per grid step (4 tiles combined) so
    # the fixed ~0.35 us per-step overhead stays small even at v7x HBM rates.
    target_rows = max(pack, (8 * 1024 * 1024) // (4 * feat * itemsize))

    tile = min(batch, max_rows, target_rows, 4096)

    # Keep >= 2 grid blocks whenever the batch allows it so both v7x
    # TensorCores get work (the grid axis is "parallel"); harmless elsewhere.
    if batch > pack:
        half = max(pack, (pl.cdiv(batch, 2) // pack) * pack)
        tile = min(tile, half)

    if tile >= batch:
        return batch
    return max(pack, (tile // pack) * pack)


def negative_cosine_similarity(p1, p2, z1, z2, mode: str = "simplified",
                               tile_b: int | None = None,
                               input_buffer_count: int = 2):
    """SimSiam loss: 0.5 * (-mean cos(p1, z2)) + 0.5 * (-mean cos(p2, z1))."""
    assert mode in ("simplified", "original")
    assert p1.shape == p2.shape == z1.shape == z2.shape and p1.ndim == 2
    assert p1.dtype == p2.dtype == z1.dtype == z2.dtype
    B, D = p1.shape
    itemsize = jnp.dtype(p1.dtype).itemsize
    pack = max(8, 32 // itemsize)        # sublane rows per vreg (f32/bf16/i8)
    buffer_count = max(2, int(input_buffer_count))

    vmem_budget = _vmem_budget_bytes()
    if tile_b is None:
        tile_b = _choose_tile_b(B, D, itemsize, pack, vmem_budget, buffer_count)
    tile_b = min(tile_b, B)
    assert tile_b == B or tile_b % pack == 0, (
        f"tile_b must equal B or be a multiple of {pack} for dtype {p1.dtype}")

    num_blocks = pl.cdiv(B, tile_b)
    kernel = functools.partial(_neg_cos_partial_kernel, mode=mode, batch=B,
                               tile_b=tile_b, feat=D)

    def _make_in_spec():
        idx_map = lambda i: (i, 0)
        if buffer_count > 2:
            # Opt-in deeper pipelining for small-tile configs (sweep knob).
            try:
                return pl.BlockSpec((tile_b, D), idx_map,
                                    pipeline_mode=pl.Buffered(buffer_count))
            except Exception:
                pass
        return pl.BlockSpec((tile_b, D), idx_map)

    in_spec = _make_in_spec()
    cost = pl.CostEstimate(
        flops=12 * B * D,                      # 3 mul+add reductions x 2 pairs
        transcendentals=4 * B,                 # rsqrt per norm per pair
        bytes_accessed=4 * B * D * itemsize + num_blocks * 8 * 128 * 4)

    partials = pl.pallas_call(
        kernel,
        out_shape=jax.ShapeDtypeStruct((num_blocks, 8, 128), jnp.float32),
        grid=(num_blocks,),
        in_specs=[in_spec, in_spec, in_spec, in_spec],
        out_specs=pl.BlockSpec((1, 8, 128), lambda i: (i, 0, 0)),
        compiler_params=pltpu.CompilerParams(
            dimension_semantics=("parallel",),
            vmem_limit_bytes=int(vmem_budget)),
        cost_estimate=cost,
    )(p1, z2, p2, z1)

    # Final reduction over per-block partial sums; divide by the true B.
    return jnp.sum(partials[:, 0, 0]) / jnp.float32(B)


def _reference(p1, p2, z1, z2, mode: str = "simplified"):
    """Pure-JAX reference mirroring the PyTorch module (PyTorch eps rules)."""
    p1, p2, z1, z2 = (x.astype(jnp.float32) for x in (p1, p2, z1, z2))

    def fwd2(p, z):  # simplified: F.cosine_similarity (product-of-norms clamp)
        eps = 1e-8
        dot = jnp.sum(p * z, axis=-1)
        den = jnp.maximum(
            jnp.sqrt(jnp.sum(p * p, axis=-1) * jnp.sum(z * z, axis=-1)), eps)
        return -jnp.mean(dot / den)

    def fwd1(p, z):  # original: F.normalize, eps=1e-12 per-norm clamp
        eps = 1e-12
        pn = jnp.maximum(jnp.linalg.norm(p, axis=-1, keepdims=True), eps)
        zn = jnp.maximum(jnp.linalg.norm(z, axis=-1, keepdims=True), eps)
        return -jnp.mean(jnp.sum((p / pn) * (z / zn), axis=-1))

    fn = fwd2 if mode == "simplified" else fwd1
    return 0.5 * fn(p1, z2) + 0.5 * fn(p2, z1)


if __name__ == "__main__":
    key = jax.random.PRNGKey(0)
    ok = True

    # Config 1: single-tile f32 path (SimSiam-style small batch / proj dim).
    # Config 2: multi-tile f32 path with a ragged last tile (exercises mask).
    # Config 3: bf16 path (native-dtype reads, 16-row sublane packing).
    configs = (
        (8, 32, jnp.float32, None),
        (20, 32, jnp.float32, 8),
        (32, 256, jnp.bfloat16, None),
    )
    for (B, D, dtype, tb) in configs:
        key, k1, k2, k3, k4 = jax.random.split(key, 5)
        p1 = jax.random.normal(k1, (B, D), dtype=dtype)
        p2 = jax.random.normal(k2, (B, D), dtype=dtype)
        z1 = jax.random.normal(k3, (B, D), dtype=dtype)
        z2 = jax.random.normal(k4, (B, D), dtype=dtype)

        for mode in ("simplified", "original"):
            loss = negative_cosine_similarity(p1, p2, z1, z2, mode=mode,
                                              tile_b=tb)
            loss = jax.block_until_ready(loss)
            ref = _reference(p1, p2, z1, z2, mode=mode)
            if not jnp.allclose(loss, ref, atol=1e-5, rtol=1e-5):
                ok = False
                print(f"MISMATCH B={B} D={D} dtype={jnp.dtype(dtype).name} "
                      f"tile_b={tb} mode={mode}: kernel={loss} ref={ref}")

    if ok:
        print("KERNEL_OK")
</pallas_src>

<mosaic_0001>
module attributes {stable_mosaic.version = 11 : i64} {
  func.func @_neg_cos_partial_kernel(%arg0: i32, %arg1: memref<8x32xf32, #tpu.memory_space<vmem>>, %arg2: memref<8x32xf32, #tpu.memory_space<vmem>>, %arg3: memref<8x32xf32, #tpu.memory_space<vmem>>, %arg4: memref<8x32xf32, #tpu.memory_space<vmem>>, %arg5: memref<1x8x128xf32, #tpu.memory_space<vmem>>) attributes {dimension_semantics = [#tpu.dimension_semantics<parallel>], iteration_bounds = array<i64: 1>, scalar_prefetch = 0 : i64, scratch_operands = 0 : i64, tpu.core_type = #tpu.core_type<tc>, window_params = [{transform_indices = @transform_0, window_bounds = array<i64: 8, 32>}, {transform_indices = @transform_1, window_bounds = array<i64: 8, 32>}, {transform_indices = @transform_2, window_bounds = array<i64: 8, 32>}, {transform_indices = @transform_3, window_bounds = array<i64: 8, 32>}, {transform_indices = @transform_4, window_bounds = array<i64: 1, 8, 128>}]} {
    %c0 = arith.constant 0 : index
    %c0_0 = arith.constant 0 : index
    %0 = vector.load %arg1[%c0, %c0_0] : memref<8x32xf32, #tpu.memory_space<vmem>>, vector<8x32xf32>
    %c0_1 = arith.constant 0 : index
    %c0_2 = arith.constant 0 : index
    %1 = vector.load %arg2[%c0_1, %c0_2] : memref<8x32xf32, #tpu.memory_space<vmem>>, vector<8x32xf32>
    %2 = arith.mulf %0, %1 : vector<8x32xf32>
    %cst = arith.constant dense<0.000000e+00> : vector<8xf32>
    %3 = vector.multi_reduction <add>, %2, %cst [1] : vector<8x32xf32> to vector<8xf32>
    %4 = vector.shape_cast %3 : vector<8xf32> to vector<8x1xf32>
    %5 = arith.mulf %0, %0 : vector<8x32xf32>
    %cst_3 = arith.constant dense<0.000000e+00> : vector<8xf32>
    %6 = vector.multi_reduction <add>, %5, %cst_3 [1] : vector<8x32xf32> to vector<8xf32>
    %7 = vector.shape_cast %6 : vector<8xf32> to vector<8x1xf32>
    %8 = arith.mulf %1, %1 : vector<8x32xf32>
    %cst_4 = arith.constant dense<0.000000e+00> : vector<8xf32>
    %9 = vector.multi_reduction <add>, %8, %cst_4 [1] : vector<8x32xf32> to vector<8xf32>
    %10 = vector.shape_cast %9 : vector<8xf32> to vector<8x1xf32>
    %11 = arith.mulf %7, %10 : vector<8x1xf32>
    %cst_5 = arith.constant 9.99999993E-9 : f32
    %cst_6 = arith.constant 9.99999993E-9 : f32
    %12 = arith.mulf %cst_5, %cst_6 : f32
    %13 = vector.broadcast %12 : f32 to vector<8x1xf32>
    %14 = arith.maximumf %11, %13 : vector<8x1xf32>
    %15 = math.rsqrt %14 : vector<8x1xf32>
    %16 = arith.mulf %4, %15 : vector<8x1xf32>
    %17 = vector.shape_cast %16 : vector<8x1xf32> to vector<1x8x1xf32>
    %cst_7 = arith.constant dense<0.000000e+00> : vector<1xf32>
    %18 = vector.multi_reduction <add>, %17, %cst_7 [1, 2] : vector<1x8x1xf32> to vector<1xf32>
    %19 = vector.shape_cast %18 : vector<1xf32> to vector<1x1x1xf32>
    %20 = vector.extract %19[0, 0, 0] : f32 from vector<1x1x1xf32>
    %c0_8 = arith.constant 0 : index
    %c0_9 = arith.constant 0 : index
    %21 = vector.load %arg3[%c0_8, %c0_9] : memref<8x32xf32, #tpu.memory_space<vmem>>, vector<8x32xf32>
    %c0_10 = arith.constant 0 : index
    %c0_11 = arith.constant 0 : index
    %22 = vector.load %arg4[%c0_10, %c0_11] : memref<8x32xf32, #tpu.memory_space<vmem>>, vector<8x32xf32>
    %23 = arith.mulf %21, %22 : vector<8x32xf32>
    %cst_12 = arith.constant dense<0.000000e+00> : vector<8xf32>
    %24 = vector.multi_reduction <add>, %23, %cst_12 [1] : vector<8x32xf32> to vector<8xf32>
    %25 = vector.shape_cast %24 : vector<8xf32> to vector<8x1xf32>
    %26 = arith.mulf %21, %21 : vector<8x32xf32>
    %cst_13 = arith.constant dense<0.000000e+00> : vector<8xf32>
    %27 = vector.multi_reduction <add>, %26, %cst_13 [1] : vector<8x32xf32> to vector<8xf32>
    %28 = vector.shape_cast %27 : vector<8xf32> to vector<8x1xf32>
    %29 = arith.mulf %22, %22 : vector<8x32xf32>
    %cst_14 = arith.constant dense<0.000000e+00> : vector<8xf32>
    %30 = vector.multi_reduction <add>, %29, %cst_14 [1] : vector<8x32xf32> to vector<8xf32>
    %31 = vector.shape_cast %30 : vector<8xf32> to vector<8x1xf32>
    %32 = arith.mulf %28, %31 : vector<8x1xf32>
    %cst_15 = arith.constant 9.99999993E-9 : f32
    %cst_16 = arith.constant 9.99999993E-9 : f32
    %33 = arith.mulf %cst_15, %cst_16 : f32
    %34 = vector.broadcast %33 : f32 to vector<8x1xf32>
    %35 = arith.maximumf %32, %34 : vector<8x1xf32>
    %36 = math.rsqrt %35 : vector<8x1xf32>
    %37 = arith.mulf %25, %36 : vector<8x1xf32>
    %38 = vector.shape_cast %37 : vector<8x1xf32> to vector<1x8x1xf32>
    %cst_17 = arith.constant dense<0.000000e+00> : vector<1xf32>
    %39 = vector.multi_reduction <add>, %38, %cst_17 [1, 2] : vector<1x8x1xf32> to vector<1xf32>
    %40 = vector.shape_cast %39 : vector<1xf32> to vector<1x1x1xf32>
    %41 = vector.extract %40[0, 0, 0] : f32 from vector<1x1x1xf32>
    %42 = arith.addf %20, %41 : f32
    %cst_18 = arith.constant -5.000000e-01 : f32
    %43 = arith.mulf %cst_18, %42 : f32
    %44 = vector.broadcast %43 : f32 to vector<1x8x128xf32>
    %c0_19 = arith.constant 0 : index
    %c0_20 = arith.constant 0 : index
    %c0_21 = arith.constant 0 : index
    %45 = vector.load %arg5[%c0_19, %c0_20, %c0_21] : memref<1x8x128xf32, #tpu.memory_space<vmem>>, vector<1x8x128xf32>
    tpu.vector_store %arg5[%c0_19, %c0_20, %c0_21], %44 {strides = array<i32>} : memref<1x8x128xf32, #tpu.memory_space<vmem>>, vector<1x8x128xf32>,
    return
  }
  func.func @transform_0(%arg0: i32) -> (i32, i32) {
    %c0_i32 = arith.constant 0 : i32
    %c0_i32_0 = arith.constant 0 : i32
    return %arg0, %c0_i32 : i32, i32
  }
  func.func @transform_1(%arg0: i32) -> (i32, i32) {
    %c0_i32 = arith.constant 0 : i32
    %c0_i32_0 = arith.constant 0 : i32
    return %arg0, %c0_i32 : i32, i32
  }
  func.func @transform_2(%arg0: i32) -> (i32, i32) {
    %c0_i32 = arith.constant 0 : i32
    %c0_i32_0 = arith.constant 0 : i32
    return %arg0, %c0_i32 : i32, i32
  }
  func.func @transform_3(%arg0: i32) -> (i32, i32) {
    %c0_i32 = arith.constant 0 : i32
    %c0_i32_0 = arith.constant 0 : i32
    return %arg0, %c0_i32 : i32, i32
  }
  func.func @transform_4(%arg0: i32) -> (i32, i32, i32) {
    %c0_i32 = arith.constant 0 : i32
    %c0_i32_0 = arith.constant 0 : i32
    %c0_i32_1 = arith.constant 0 : i32
    return %arg0, %c0_i32, %c0_i32_0 : i32, i32, i32
  }
}

</mosaic_0001>

<llo_original>
// kernel: tpu_custom_call.1
$region0: #{tpu_custom_call.1}
  #allocation0 [shape = 'u32[]', space=smem, size = 0x4, offset = 0x4, fixed_abs, tag = 'smem constant byte address 0x4 - core index']
  #allocation1 [shape = 'u32[144,128]{1,0:T(1,128)}', space=vmem, size = 0x12000, scoped, tag = 'internal scratch']
  %s0 = inlined_call_operand.hbm [shape: f32[8,32], index: 0, kind: input, shape index: {}]
  %s1 = inlined_call_operand.hbm [shape: f32[8,32], index: 1, kind: input, shape index: {}]
  %s2 = inlined_call_operand.hbm [shape: f32[8,32], index: 2, kind: input, shape index: {}]
  %s3 = inlined_call_operand.vmem [shape: f32[8,32], index: 3, kind: input, shape index: {}]
  %s4 = inlined_call_operand.hbm [shape: f32[1,8,128], index: 4, kind: output, shape index: {}]
  %s5 = sld [smem:[#allocation0]]
  $region38: #{tpu_custom_call.1} parent=0
    _
  %s7 = ssub.s32 1, %s5
  %s8 = scalar_select 0, %s7, %s5
  $region1: #{tpu_custom_call.1} parent=0
    #allocation2 [shape = 'u8[4096]{0}', space=vmem, size = 0x1000, scoped, tag = 'input window, operand 0, single buffered']
    #allocation3 [shape = 's32[1]{0}', space=sflag, size = 0x4, scoped, tag = 'scoped memory for tpu_custom_call.1']
    #allocation4 [shape = 's32[1]{0}', space=sflag, size = 0x4, scoped, tag = 'scoped memory for tpu_custom_call.1']
    #allocation5 [shape = 'u8[4096]{0}', space=vmem, size = 0x1000, scoped, tag = 'input window, operand 1, single buffered']
    #allocation6 [shape = 's32[1]{0}', space=sflag, size = 0x4, scoped, tag = 'scoped memory for tpu_custom_call.1']
    #allocation7 [shape = 'u8[4096]{0}', space=vmem, size = 0x1000, scoped, tag = 'input window, operand 2, single buffered']
    #allocation8 [shape = 'u8[4096]{0}', space=vmem, size = 0x1000, scoped, tag = 'output window, operand 0, single buffered']
    %9 = vsyncpa [#allocation3], 0
    %10 = vsyncpa [#allocation6], 0
    %11 = vsyncpa [#allocation4], 0
    // Predicated region
    $region2: #{tpu_custom_call.1} parent=1 // pred_check
      _
    $region3: #{tpu_custom_call.1} parent=1 // pred_check_branch
      %13 = sbr.rel (0) target = $region5
    $region4: #{tpu_custom_call.1} parent=1 // pred_region
      %s15 = ssub.s32 128, 128
      %16 = vsyncadd [#allocation3], %s15
      %s18 = sshll.u32 [#allocation2], 4
      %s19 = int_to_ptr.vmem [resolvable:$true] %s18
      %21 = dma.hbm_to_vmem [thread:$0]  %s0, 128, %s19, [#allocation3]
    $region5: #{tpu_custom_call.1} parent=1 // pred_fallthru
      _
    // Predicated region
    $region6: #{tpu_custom_call.1} parent=1 // pred_check
      _
    $region7: #{tpu_custom_call.1} parent=1 // pred_check_branch
      %23 = sbr.rel (0) target = $region9
    $region8: #{tpu_custom_call.1} parent=1 // pred_region
      %s25 = ssub.s32 128, 128
      %26 = vsyncadd [#allocation6], %s25
      %s28 = sshll.u32 [#allocation5], 4
      %s29 = int_to_ptr.vmem [resolvable:$true] %s28
      %31 = dma.hbm_to_vmem [thread:$0]  %s1, 128, %s29, [#allocation6]
    $region9: #{tpu_custom_call.1} parent=1 // pred_fallthru
      _
    // Predicated region
    $region10: #{tpu_custom_call.1} parent=1 // pred_check
      _
    $region11: #{tpu_custom_call.1} parent=1 // pred_check_branch
      %33 = sbr.rel (0) target = $region13
    $region12: #{tpu_custom_call.1} parent=1 // pred_region
      %s35 = ssub.s32 128, 128
      %36 = vsyncadd [#allocation6], %s35
      %s38 = sshll.u32 [#allocation7], 4
      %s39 = int_to_ptr.vmem [resolvable:$true] %s38
      %41 = dma.hbm_to_vmem [thread:$0]  %s2, 128, %s39, [#allocation6]
    $region13: #{tpu_custom_call.1} parent=1 // pred_fallthru
      _
    // Predicated region
    $region14: #{tpu_custom_call.1} parent=1 // pred_check
      _
    $region15: #{tpu_custom_call.1} parent=1 // pred_check_branch
      %43 = sbr.rel (0) target = $region17
    $region16: #{tpu_custom_call.1} parent=1 // pred_region
      _
    $region17: #{tpu_custom_call.1} parent=1 // pred_fallthru
      _
    // Predicated region
    $region18: #{tpu_custom_call.1} parent=1 // pred_check
      _
    $region19: #{tpu_custom_call.1} parent=1 // pred_check_branch
      %45 = sbr.rel (0) target = $region21
    $region20: #{tpu_custom_call.1} parent=1 // pred_region
      %46 = dma.done [#allocation3], 128
    $region21: #{tpu_custom_call.1} parent=1 // pred_fallthru
      _
    // Predicated region
    $region22: #{tpu_custom_call.1} parent=1 // pred_check
      _
    $region23: #{tpu_custom_call.1} parent=1 // pred_check_branch
      %48 = sbr.rel (0) target = $region25
    $region24: #{tpu_custom_call.1} parent=1 // pred_region
      %49 = dma.done [#allocation6], 128
    $region25: #{tpu_custom_call.1} parent=1 // pred_fallthru
      _
    // Predicated region
    $region26: #{tpu_custom_call.1} parent=1 // pred_check
      _
    $region27: #{tpu_custom_call.1} parent=1 // pred_check_branch
      %51 = sbr.rel (0) target = $region29
    $region28: #{tpu_custom_call.1} parent=1 // pred_region
      %52 = dma.done [#allocation6], 128
    $region29: #{tpu_custom_call.1} parent=1 // pred_fallthru
      _
    %v53 = vld [vmem:[#allocation2] sm:$0xff]
    %v54 = vld [vmem:[#allocation5] sm:$0xff]
    %v55 = vmul.f32 %v53, %v54
    %vm56 = vcmask 261120
    %v57 = vsel %vm56, %v55, 0.0
    %58 = vadd.xlane.f32.xlu0 %v57
    %v59 = vpop.xlane.xlu0 %58
    %v60 = vmul.f32 %v53, %v53
    %v61 = vsel %vm56, %v60, 0.0
    %62 = vadd.xlane.f32.xlu0 %v61
    %v63 = vpop.xlane.xlu0 %62
    %v64 = vmul.f32 %v54, %v54
    %v65 = vsel %vm56, %v64, 0.0
    %66 = vadd.xlane.f32.xlu0 %v65
    %v67 = vpop.xlane.xlu0 %66
    %v68 = vmul.f32 %v63, %v67
    %v69 = vmax.f32 %v68, 1e-16
    %v70 = vrsqrt.pop %v69
    %v71 = vmul.f32 %v59, %v70
    %vm72 = vcmask 7168
    %v73 = vsel %vm72, %v71, 0.0
    %74 = vadd.xlane.f32.xlu0 %v73
    %v75 = vpop.xlane.xlu0 %74
    %v76 = vrot.slane %v75, 4
    %v77 = vadd.f32 %v75, %v76
    %v78 = vrot.slane %v77, 2
    %v79 = vadd.f32 %v77, %v78
    %v80 = vrot.slane %v79, 1
    %v81 = vadd.f32 %v79, %v80
    %s82 = vtos %v81
    %v83 = vld [vmem:[#allocation7] sm:$0xff]
    %v84 = vld [vmem:[%s3] sm:$0xff]
    %v85 = vmul.f32 %v83, %v84
    %v86 = vsel %vm56, %v85, 0.0
    %87 = vadd.xlane.f32.xlu0 %v86
    %v88 = vpop.xlane.xlu0 %87
    %v89 = vmul.f32 %v83, %v83
    %v90 = vsel %vm56, %v89, 0.0
    %91 = vadd.xlane.f32.xlu0 %v90
    %v92 = vpop.xlane.xlu0 %91
    %v93 = vmul.f32 %v84, %v84
    %v94 = vsel %vm56, %v93, 0.0
    %95 = vadd.xlane.f32.xlu0 %v94
    %v96 = vpop.xlane.xlu0 %95
    %v97 = vmul.f32 %v92, %v96
    %v98 = vmax.f32 %v97, 1e-16
    %v99 = vrsqrt.pop %v98
    %v100 = vmul.f32 %v88, %v99
    %v101 = vsel %vm72, %v100, 0.0
    %102 = vadd.xlane.f32.xlu0 %v101
    %v103 = vpop.xlane.xlu0 %102
    %v104 = vrot.slane %v103, 4
    %v105 = vadd.f32 %v103, %v104
    %v106 = vrot.slane %v105, 2
    %v107 = vadd.f32 %v105, %v106
    %v108 = vrot.slane %v107, 1
    %v109 = vadd.f32 %v107, %v108
    %s110 = vtos %v109
    %s111 = sadd.f32 %s82, %s110
    %s112 = smul.f32 %s111, -0.5
    %v113 = vstv %s112
    %114 = vst [vmem:[#allocation8] sm:$0xff] %v113
    // Predicated region
    $region30: #{tpu_custom_call.1} parent=1 // pred_check
      _
    $region31: #{tpu_custom_call.1} parent=1 // pred_check_branch
      %116 = sbr.rel (0) target = $region33
    $region32: #{tpu_custom_call.1} parent=1 // pred_region
      %s118 = ssub.s32 128, 128
      %119 = vsyncadd [#allocation4], %s118
      %s121 = sshll.u32 [#allocation8], 4
      %s122 = int_to_ptr.vmem [resolvable:$true] %s121
      %124 = dma.vmem_to_hbm [thread:$0]  %s122, 128, %s4, [#allocation4]
    $region33: #{tpu_custom_call.1} parent=1 // pred_fallthru
      _
    // Predicated region
    $region34: #{tpu_custom_call.1} parent=1 // pred_check
      _
    $region35: #{tpu_custom_call.1} parent=1 // pred_check_branch
      %126 = sbr.rel (0) target = $region37
    $region36: #{tpu_custom_call.1} parent=1 // pred_region
      %127 = dma.done [#allocation4], 128
    $region37: #{tpu_custom_call.1} parent=1 // pred_fallthru
      _
    %128 = vsyncpa [#allocation3], 1
    %129 = vsyncpa [#allocation6], 1
    %130 = vsyncpa [#allocation4], 1

</llo_original>
